<compile_context>
chip_gen: v5e
topology: v5e:2x2
jax: 0.10.0
libtpu: 0.0.40
codegen_flags: <defaults>
</compile_context>

<pallas_src>
import functools

import jax
import jax.numpy as jnp
from jax.experimental import pallas as pl
from jax.experimental.pallas import tpu as pltpu

block_size = 8
n_embd = 32
num_heads = 4
head_size = n_embd // num_heads


def _mha_kernel(T, H, hs, x_ref, wqkv_ref, wp_ref, bp_ref, o_ref, cat_ref):
    # x_ref:    (Mb, C)     flattened (batch, time) rows, compute dtype (f32/bf16)
    # wqkv_ref: (C, 128)    fused [Q | K | V] weights (Q pre-scaled), lane-padded
    # wp_ref:   (C, C)      output projection (pre-transposed; rows = concat'd heads)
    # bp_ref:   (1, C)      output projection bias (f32)
    # o_ref:    (Mb, C)     output block
    # cat_ref:  (Mb, H*hs)  f32 VMEM scratch: concatenated head outputs
    M, C = x_ref.shape
    Bt = M // T
    Hhs = H * hs

    # One lane-dense (M,C)x(C,128) MXU pass for every head's Q/K/V projection
    # (attention scale folded into Q columns at prep time; f32 accumulation).
    qkv = jnp.dot(x_ref[...], wqkv_ref[...], preferred_element_type=jnp.float32)

    # Three contiguous slabs; (Bt*T, Hhs) -> (Bt, T, Hhs) is a leading-dim
    # split (no relayout).
    q_all = qkv[:, 0 * Hhs:1 * Hhs].reshape(Bt, T, Hhs)
    k_all = qkv[:, 1 * Hhs:2 * Hhs].reshape(Bt, T, Hhs)
    v_all = qkv[:, 2 * Hhs:3 * Hhs].reshape(Bt, T, Hhs)

    # Causal mask shared across batch items / heads.  Finite fill (-1e30, not
    # -inf) keeps padded batch rows NaN-free; the wrapper slices them off.
    row = jax.lax.broadcasted_iota(jnp.int32, (1, T, T), 1)
    col = jax.lax.broadcasted_iota(jnp.int32, (1, T, T), 2)
    causal = row >= col
    neg = jnp.float32(-1e30)

    # Per-head attention as Bt-batched (leading-batch) 3-D einsums.  H is tiny
    # and static, so this unrolls; each head writes its output into its lane
    # slot of cat_ref so the output projection below is a single K=H*hs pass.
    for h in range(H):
        q = q_all[:, :, h * hs:(h + 1) * hs]
        k = k_all[:, :, h * hs:(h + 1) * hs]
        v = v_all[:, :, h * hs:(h + 1) * hs]

        s = jnp.einsum('bqd,bkd->bqk', q, k, preferred_element_type=jnp.float32)
        s = jnp.where(causal, s, neg)
        s = s - jnp.max(s, axis=-1, keepdims=True)
        p = jnp.exp(s)
        # One reciprocal (EUP slot) + broadcast multiply, not a full divide.
        p = p * pl.reciprocal(jnp.sum(p, axis=-1, keepdims=True), approx=False)

        o_h = jnp.einsum('bqk,bkd->bqd', p, v, preferred_element_type=jnp.float32)
        cat_ref[:, h * hs:(h + 1) * hs] = o_h.reshape(M, hs)

    # Fused head-concat + output projection: one (M, H*hs) x (H*hs, C) matmul.
    proj = jnp.dot(cat_ref[...].astype(wp_ref.dtype), wp_ref[...],
                   preferred_element_type=jnp.float32)
    o_ref[...] = (proj + bp_ref[...]).astype(o_ref.dtype)


def prepare_mha_params(wq, wk, wv, wp_t, bp, *, compute_dtype=jnp.bfloat16):
    """One-time parameter prep (hoisted out of the per-step forward).

    wq/wk/wv: (H, C, hs) per-head weights, stored (in, out)-transposed.
    wp_t:     (C, C) output projection, pre-transposed.
    bp:       (C,) or (1, C) output projection bias.
    """
    H, C, hs = wq.shape
    scale = C ** (-0.5)   # matches the PyTorch module: n_embd ** -0.5
    wq_f = (wq * scale).transpose(1, 0, 2).reshape(C, H * hs)
    wk_f = wk.transpose(1, 0, 2).reshape(C, H * hs)
    wv_f = wv.transpose(1, 0, 2).reshape(C, H * hs)
    wqkv = jnp.concatenate([wq_f, wk_f, wv_f], axis=1)
    lane_pad = (-wqkv.shape[1]) % 128
    if lane_pad:
        wqkv = jnp.pad(wqkv, ((0, 0), (0, lane_pad)))
    return (wqkv.astype(compute_dtype),
            wp_t.astype(compute_dtype),
            jnp.asarray(bp, jnp.float32).reshape(1, C),
            H, hs)


def multi_head_attention(x, params, *, bt=None):
    """x: (B, T, C) -> (B, T, C). params: output of prepare_mha_params()."""
    wqkv, wp, bp, H, hs = params
    B, T, C = x.shape
    compute_dtype = wqkv.dtype
    itemsize = jnp.dtype(compute_dtype).itemsize

    # ---- batch tiling ------------------------------------------------------
    # ~2 MiB of x per block (amortizes ~0.35 us/step overhead), hard cap of
    # 16K rows so f32 intermediates stay well inside v7x's 64 MiB VMEM, and
    # >= 4 grid steps when B allows (v7x: 2 TensorCores x >= 2 steps each).
    if bt is None:
        rows_target = min((2 << 20) // max(1, C * itemsize), 16384)
        bt_target = max(1, rows_target // T)
        bt = max(1, min(bt_target, B // 4)) if B >= 4 else max(1, B // 2)
    n_blocks = pl.cdiv(B, bt)
    B_pad = n_blocks * bt
    Mb = bt * T

    x2d = x.reshape(B * T, C).astype(compute_dtype)
    if B_pad != B:
        x2d = jnp.pad(x2d, ((0, (B_pad - B) * T), (0, 0)))

    kernel = functools.partial(_mha_kernel, T, H, hs)
    out2d = pl.pallas_call(
        kernel,
        out_shape=jax.ShapeDtypeStruct((B_pad * T, C), x.dtype),
        grid=(n_blocks,),
        in_specs=[
            pl.BlockSpec((Mb, C), lambda i: (i, 0)),
            pl.BlockSpec(wqkv.shape, lambda i: (0, 0)),
            pl.BlockSpec(wp.shape, lambda i: (0, 0)),
            pl.BlockSpec(bp.shape, lambda i: (0, 0)),
        ],
        out_specs=pl.BlockSpec((Mb, C), lambda i: (i, 0)),
        scratch_shapes=[pltpu.VMEM((Mb, H * hs), jnp.float32)],
        compiler_params=pltpu.CompilerParams(
            dimension_semantics=("parallel",),
            vmem_limit_bytes=64 << 20),
    )(x2d, wqkv, wp, bp)

    if B_pad != B:
        out2d = out2d[: B * T]
    return out2d.reshape(B, T, C)


def reference(x, wq, wk, wv, wp_t, bp):
    # Pure-JAX reference of the PyTorch forward (for correctness check).
    B, T, C = x.shape
    scale = C ** (-0.5)
    tril = jnp.tril(jnp.ones((T, T), dtype=bool))
    outs = []
    for h in range(wq.shape[0]):
        q = x @ wq[h]
        k = x @ wk[h]
        v = x @ wv[h]
        wei = (q @ jnp.swapaxes(k, -1, -2)) * scale
        wei = jnp.where(tril, wei, -jnp.inf)
        wei = jax.nn.softmax(wei, axis=-1)
        outs.append(wei @ v)
    cat = jnp.concatenate(outs, axis=-1)
    return cat @ wp_t + jnp.asarray(bp).reshape(1, C)


if __name__ == "__main__":
    key = jax.random.PRNGKey(0)
    kx, kq, kk, kv, kp, kb = jax.random.split(key, 6)

    B, T, C = 2, block_size, n_embd
    x = jax.random.normal(kx, (B, T, C), dtype=jnp.float32)

    # Deterministic synthetic parameters (PyTorch Linear weight is (out, in);
    # here stored pre-transposed as (in, out), stacked over heads).
    wq = jax.random.normal(kq, (num_heads, n_embd, head_size), jnp.float32) * 0.1
    wk = jax.random.normal(kk, (num_heads, n_embd, head_size), jnp.float32) * 0.1
    wv = jax.random.normal(kv, (num_heads, n_embd, head_size), jnp.float32) * 0.1
    wp_t = jax.random.normal(kp, (n_embd, n_embd), jnp.float32) * 0.1
    bp = jax.random.normal(kb, (1, n_embd), jnp.float32) * 0.1

    ref = reference(x, wq, wk, wv, wp_t, bp)

    # f32 matmul-input path: tight tolerance.
    params_f32 = prepare_mha_params(wq, wk, wv, wp_t, bp,
                                    compute_dtype=jnp.float32)
    out_f32 = jax.block_until_ready(multi_head_attention(x, params_f32))
    assert out_f32.shape == (B, T, C)
    assert jnp.allclose(out_f32, ref, atol=5e-5, rtol=5e-5)

    # bf16 matmul-input path (default; f32 accumulation + f32 softmax inside).
    params_bf16 = prepare_mha_params(wq, wk, wv, wp_t, bp,
                                     compute_dtype=jnp.bfloat16)
    out_bf16 = jax.block_until_ready(multi_head_attention(x, params_bf16))
    assert out_bf16.shape == (B, T, C)
    assert jnp.allclose(out_bf16, ref, atol=5e-2, rtol=5e-2)

    print("KERNEL_OK")
</pallas_src>

<mosaic_0001>
module attributes {stable_mosaic.version = 11 : i64} {
  func.func @_mha_kernel(%arg0: i32, %arg1: memref<8x32xf32, #tpu.memory_space<vmem>>, %arg2: memref<32x128xf32, #tpu.memory_space<vmem>>, %arg3: memref<32x32xf32, #tpu.memory_space<vmem>>, %arg4: memref<1x32xf32, #tpu.memory_space<vmem>>, %arg5: memref<8x32xf32, #tpu.memory_space<vmem>>, %arg6: memref<8x32xf32, #tpu.memory_space<vmem>>) attributes {dimension_semantics = [#tpu.dimension_semantics<parallel>], iteration_bounds = array<i64: 2>, scalar_prefetch = 0 : i64, scratch_operands = 1 : i64, tpu.core_type = #tpu.core_type<tc>, window_params = [{transform_indices = @transform_0, window_bounds = array<i64: 8, 32>}, {pipeline_mode = #tpu.pipeline_mode<synchronous>, transform_indices = @transform_1, window_bounds = array<i64: 32, 128>}, {pipeline_mode = #tpu.pipeline_mode<synchronous>, transform_indices = @transform_2, window_bounds = array<i64: 32, 32>}, {pipeline_mode = #tpu.pipeline_mode<synchronous>, transform_indices = @transform_3, window_bounds = array<i64: 1, 32>}, {transform_indices = @transform_4, window_bounds = array<i64: 8, 32>}]} {
    %c0 = arith.constant 0 : index
    %c0_0 = arith.constant 0 : index
    %0 = vector.load %arg1[%c0, %c0_0] : memref<8x32xf32, #tpu.memory_space<vmem>>, vector<8x32xf32>
    %c0_1 = arith.constant 0 : index
    %c0_2 = arith.constant 0 : index
    %1 = vector.load %arg2[%c0_1, %c0_2] : memref<32x128xf32, #tpu.memory_space<vmem>>, vector<32x128xf32>
    %cst = arith.constant dense<0.000000e+00> : vector<8x128xf32>
    %2 = tpu.matmul %0, %1, %cst {dimension_numbers = #tpu.dot_dimension_numbers<[1], [0], [0], [1], [0, 0, 1, 1], [], []>} : vector<8x32xf32>, vector<32x128xf32>, vector<8x128xf32> -> vector<8x128xf32>
    %3 = vector.extract_strided_slice %2 {offsets = [0, 0], sizes = [8, 32], strides = [1, 1]} : vector<8x128xf32> to vector<8x32xf32>
    %4 = vector.shape_cast %3 : vector<8x32xf32> to vector<1x8x32xf32>
    %5 = vector.extract_strided_slice %2 {offsets = [0, 32], sizes = [8, 32], strides = [1, 1]} : vector<8x128xf32> to vector<8x32xf32>
    %6 = vector.shape_cast %5 : vector<8x32xf32> to vector<1x8x32xf32>
    %7 = vector.extract_strided_slice %2 {offsets = [0, 64], sizes = [8, 32], strides = [1, 1]} : vector<8x128xf32> to vector<8x32xf32>
    %8 = vector.shape_cast %7 : vector<8x32xf32> to vector<1x8x32xf32>
    %9 = tpu.iota {dimensions = array<i32: 1>} : vector<1x8x8xi32>
    %10 = tpu.iota {dimensions = array<i32: 2>} : vector<1x8x8xi32>
    %11 = arith.cmpi sge, %9, %10 : vector<1x8x8xi32>
    %12 = vector.extract_strided_slice %4 {offsets = [0, 0, 0], sizes = [1, 8, 8], strides = [1, 1, 1]} : vector<1x8x32xf32> to vector<1x8x8xf32>
    %13 = vector.extract_strided_slice %6 {offsets = [0, 0, 0], sizes = [1, 8, 8], strides = [1, 1, 1]} : vector<1x8x32xf32> to vector<1x8x8xf32>
    %14 = vector.extract_strided_slice %8 {offsets = [0, 0, 0], sizes = [1, 8, 8], strides = [1, 1, 1]} : vector<1x8x32xf32> to vector<1x8x8xf32>
    "tpu.trace_start"() <{level = 10 : i32, message = "bqd,bkd->bqk"}> : () -> ()
    %cst_3 = arith.constant dense<0.000000e+00> : vector<1x8x8xf32>
    %15 = tpu.matmul %12, %13, %cst_3 {dimension_numbers = #tpu.dot_dimension_numbers<[2], [2], [1], [1], [0, 0, 0, 1, 1, 1], [0], [0]>} : vector<1x8x8xf32>, vector<1x8x8xf32>, vector<1x8x8xf32> -> vector<1x8x8xf32>
    %cst_4 = arith.constant -1.000000e+30 : f32
    "tpu.trace_stop"() : () -> ()
    %16 = vector.broadcast %cst_4 : f32 to vector<1x8x8xf32>
    %17 = arith.select %11, %15, %16 : vector<1x8x8xi1>, vector<1x8x8xf32>
    %cst_5 = arith.constant dense<0xFF800000> : vector<1x8xf32>
    %18 = vector.multi_reduction <maximumf>, %17, %cst_5 [2] : vector<1x8x8xf32> to vector<1x8xf32>
    %19 = vector.shape_cast %18 : vector<1x8xf32> to vector<1x8x1xf32>
    %20 = vector.broadcast %19 : vector<1x8x1xf32> to vector<1x8x8xf32>
    %21 = arith.subf %17, %20 : vector<1x8x8xf32>
    %22 = math.exp %21 : vector<1x8x8xf32>
    %cst_6 = arith.constant dense<0.000000e+00> : vector<1x8xf32>
    %23 = vector.multi_reduction <add>, %22, %cst_6 [2] : vector<1x8x8xf32> to vector<1x8xf32>
    %24 = vector.shape_cast %23 : vector<1x8xf32> to vector<1x8x1xf32>
    %25 = tpu.reciprocal %24 : vector<1x8x1xf32> -> vector<1x8x1xf32>
    %26 = vector.broadcast %25 : vector<1x8x1xf32> to vector<1x8x8xf32>
    %27 = arith.mulf %22, %26 : vector<1x8x8xf32>
    "tpu.trace_start"() <{level = 10 : i32, message = "bqk,bkd->bqd"}> : () -> ()
    %cst_7 = arith.constant dense<0.000000e+00> : vector<1x8x8xf32>
    %28 = tpu.matmul %27, %14, %cst_7 {dimension_numbers = #tpu.dot_dimension_numbers<[2], [1], [1], [2], [0, 0, 0, 1, 1, 2], [0], [0]>} : vector<1x8x8xf32>, vector<1x8x8xf32>, vector<1x8x8xf32> -> vector<1x8x8xf32>
    "tpu.trace_stop"() : () -> ()
    %29 = vector.shape_cast %28 : vector<1x8x8xf32> to vector<8x8xf32>
    %c0_8 = arith.constant 0 : index
    %c0_9 = arith.constant 0 : index
    %30 = vector.load %arg6[%c0_8, %c0_9] : memref<8x32xf32, #tpu.memory_space<vmem>>, vector<8x8xf32>
    tpu.vector_store %arg6[%c0_8, %c0_9], %29 {strides = array<i32>} : memref<8x32xf32, #tpu.memory_space<vmem>>, vector<8x8xf32>,
    %31 = vector.extract_strided_slice %4 {offsets = [0, 0, 8], sizes = [1, 8, 8], strides = [1, 1, 1]} : vector<1x8x32xf32> to vector<1x8x8xf32>
    %32 = vector.extract_strided_slice %6 {offsets = [0, 0, 8], sizes = [1, 8, 8], strides = [1, 1, 1]} : vector<1x8x32xf32> to vector<1x8x8xf32>
    %33 = vector.extract_strided_slice %8 {offsets = [0, 0, 8], sizes = [1, 8, 8], strides = [1, 1, 1]} : vector<1x8x32xf32> to vector<1x8x8xf32>
    "tpu.trace_start"() <{level = 10 : i32, message = "bqd,bkd->bqk"}> : () -> ()
    %cst_10 = arith.constant dense<0.000000e+00> : vector<1x8x8xf32>
    %34 = tpu.matmul %31, %32, %cst_10 {dimension_numbers = #tpu.dot_dimension_numbers<[2], [2], [1], [1], [0, 0, 0, 1, 1, 1], [0], [0]>} : vector<1x8x8xf32>, vector<1x8x8xf32>, vector<1x8x8xf32> -> vector<1x8x8xf32>
    %cst_11 = arith.constant -1.000000e+30 : f32
    "tpu.trace_stop"() : () -> ()
    %35 = vector.broadcast %cst_11 : f32 to vector<1x8x8xf32>
    %36 = arith.select %11, %34, %35 : vector<1x8x8xi1>, vector<1x8x8xf32>
    %cst_12 = arith.constant dense<0xFF800000> : vector<1x8xf32>
    %37 = vector.multi_reduction <maximumf>, %36, %cst_12 [2] : vector<1x8x8xf32> to vector<1x8xf32>
    %38 = vector.shape_cast %37 : vector<1x8xf32> to vector<1x8x1xf32>
    %39 = vector.broadcast %38 : vector<1x8x1xf32> to vector<1x8x8xf32>
    %40 = arith.subf %36, %39 : vector<1x8x8xf32>
    %41 = math.exp %40 : vector<1x8x8xf32>
    %cst_13 = arith.constant dense<0.000000e+00> : vector<1x8xf32>
    %42 = vector.multi_reduction <add>, %41, %cst_13 [2] : vector<1x8x8xf32> to vector<1x8xf32>
    %43 = vector.shape_cast %42 : vector<1x8xf32> to vector<1x8x1xf32>
    %44 = tpu.reciprocal %43 : vector<1x8x1xf32> -> vector<1x8x1xf32>
    %45 = vector.broadcast %44 : vector<1x8x1xf32> to vector<1x8x8xf32>
    %46 = arith.mulf %41, %45 : vector<1x8x8xf32>
    "tpu.trace_start"() <{level = 10 : i32, message = "bqk,bkd->bqd"}> : () -> ()
    %cst_14 = arith.constant dense<0.000000e+00> : vector<1x8x8xf32>
    %47 = tpu.matmul %46, %33, %cst_14 {dimension_numbers = #tpu.dot_dimension_numbers<[2], [1], [1], [2], [0, 0, 0, 1, 1, 2], [0], [0]>} : vector<1x8x8xf32>, vector<1x8x8xf32>, vector<1x8x8xf32> -> vector<1x8x8xf32>
    "tpu.trace_stop"() : () -> ()
    %48 = vector.shape_cast %47 : vector<1x8x8xf32> to vector<8x8xf32>
    %c0_15 = arith.constant 0 : index
    %c8 = arith.constant 8 : index
    %49 = vector.load %arg6[%c0_15, %c8] : memref<8x32xf32, #tpu.memory_space<vmem>>, vector<8x8xf32>
    tpu.vector_store %arg6[%c0_15, %c8], %48 {strides = array<i32>} : memref<8x32xf32, #tpu.memory_space<vmem>>, vector<8x8xf32>,
    %50 = vector.extract_strided_slice %4 {offsets = [0, 0, 16], sizes = [1, 8, 8], strides = [1, 1, 1]} : vector<1x8x32xf32> to vector<1x8x8xf32>
    %51 = vector.extract_strided_slice %6 {offsets = [0, 0, 16], sizes = [1, 8, 8], strides = [1, 1, 1]} : vector<1x8x32xf32> to vector<1x8x8xf32>
    %52 = vector.extract_strided_slice %8 {offsets = [0, 0, 16], sizes = [1, 8, 8], strides = [1, 1, 1]} : vector<1x8x32xf32> to vector<1x8x8xf32>
    "tpu.trace_start"() <{level = 10 : i32, message = "bqd,bkd->bqk"}> : () -> ()
    %cst_16 = arith.constant dense<0.000000e+00> : vector<1x8x8xf32>
    %53 = tpu.matmul %50, %51, %cst_16 {dimension_numbers = #tpu.dot_dimension_numbers<[2], [2], [1], [1], [0, 0, 0, 1, 1, 1], [0], [0]>} : vector<1x8x8xf32>, vector<1x8x8xf32>, vector<1x8x8xf32> -> vector<1x8x8xf32>
    %cst_17 = arith.constant -1.000000e+30 : f32
    "tpu.trace_stop"() : () -> ()
    %54 = vector.broadcast %cst_17 : f32 to vector<1x8x8xf32>
    %55 = arith.select %11, %53, %54 : vector<1x8x8xi1>, vector<1x8x8xf32>
    %cst_18 = arith.constant dense<0xFF800000> : vector<1x8xf32>
    %56 = vector.multi_reduction <maximumf>, %55, %cst_18 [2] : vector<1x8x8xf32> to vector<1x8xf32>
    %57 = vector.shape_cast %56 : vector<1x8xf32> to vector<1x8x1xf32>
    %58 = vector.broadcast %57 : vector<1x8x1xf32> to vector<1x8x8xf32>
    %59 = arith.subf %55, %58 : vector<1x8x8xf32>
    %60 = math.exp %59 : vector<1x8x8xf32>
    %cst_19 = arith.constant dense<0.000000e+00> : vector<1x8xf32>
    %61 = vector.multi_reduction <add>, %60, %cst_19 [2] : vector<1x8x8xf32> to vector<1x8xf32>
    %62 = vector.shape_cast %61 : vector<1x8xf32> to vector<1x8x1xf32>
    %63 = tpu.reciprocal %62 : vector<1x8x1xf32> -> vector<1x8x1xf32>
    %64 = vector.broadcast %63 : vector<1x8x1xf32> to vector<1x8x8xf32>
    %65 = arith.mulf %60, %64 : vector<1x8x8xf32>
    "tpu.trace_start"() <{level = 10 : i32, message = "bqk,bkd->bqd"}> : () -> ()
    %cst_20 = arith.constant dense<0.000000e+00> : vector<1x8x8xf32>
    %66 = tpu.matmul %65, %52, %cst_20 {dimension_numbers = #tpu.dot_dimension_numbers<[2], [1], [1], [2], [0, 0, 0, 1, 1, 2], [0], [0]>} : vector<1x8x8xf32>, vector<1x8x8xf32>, vector<1x8x8xf32> -> vector<1x8x8xf32>
    "tpu.trace_stop"() : () -> ()
    %67 = vector.shape_cast %66 : vector<1x8x8xf32> to vector<8x8xf32>
    %c0_21 = arith.constant 0 : index
    %c16 = arith.constant 16 : index
    %68 = vector.load %arg6[%c0_21, %c16] : memref<8x32xf32, #tpu.memory_space<vmem>>, vector<8x8xf32>
    tpu.vector_store %arg6[%c0_21, %c16], %67 {strides = array<i32>} : memref<8x32xf32, #tpu.memory_space<vmem>>, vector<8x8xf32>,
    %69 = vector.extract_strided_slice %4 {offsets = [0, 0, 24], sizes = [1, 8, 8], strides = [1, 1, 1]} : vector<1x8x32xf32> to vector<1x8x8xf32>
    %70 = vector.extract_strided_slice %6 {offsets = [0, 0, 24], sizes = [1, 8, 8], strides = [1, 1, 1]} : vector<1x8x32xf32> to vector<1x8x8xf32>
    %71 = vector.extract_strided_slice %8 {offsets = [0, 0, 24], sizes = [1, 8, 8], strides = [1, 1, 1]} : vector<1x8x32xf32> to vector<1x8x8xf32>
    "tpu.trace_start"() <{level = 10 : i32, message = "bqd,bkd->bqk"}> : () -> ()
    %cst_22 = arith.constant dense<0.000000e+00> : vector<1x8x8xf32>
    %72 = tpu.matmul %69, %70, %cst_22 {dimension_numbers = #tpu.dot_dimension_numbers<[2], [2], [1], [1], [0, 0, 0, 1, 1, 1], [0], [0]>} : vector<1x8x8xf32>, vector<1x8x8xf32>, vector<1x8x8xf32> -> vector<1x8x8xf32>
    %cst_23 = arith.constant -1.000000e+30 : f32
    "tpu.trace_stop"() : () -> ()
    %73 = vector.broadcast %cst_23 : f32 to vector<1x8x8xf32>
    %74 = arith.select %11, %72, %73 : vector<1x8x8xi1>, vector<1x8x8xf32>
    %cst_24 = arith.constant dense<0xFF800000> : vector<1x8xf32>
    %75 = vector.multi_reduction <maximumf>, %74, %cst_24 [2] : vector<1x8x8xf32> to vector<1x8xf32>
    %76 = vector.shape_cast %75 : vector<1x8xf32> to vector<1x8x1xf32>
    %77 = vector.broadcast %76 : vector<1x8x1xf32> to vector<1x8x8xf32>
    %78 = arith.subf %74, %77 : vector<1x8x8xf32>
    %79 = math.exp %78 : vector<1x8x8xf32>
    %cst_25 = arith.constant dense<0.000000e+00> : vector<1x8xf32>
    %80 = vector.multi_reduction <add>, %79, %cst_25 [2] : vector<1x8x8xf32> to vector<1x8xf32>
    %81 = vector.shape_cast %80 : vector<1x8xf32> to vector<1x8x1xf32>
    %82 = tpu.reciprocal %81 : vector<1x8x1xf32> -> vector<1x8x1xf32>
    %83 = vector.broadcast %82 : vector<1x8x1xf32> to vector<1x8x8xf32>
    %84 = arith.mulf %79, %83 : vector<1x8x8xf32>
    "tpu.trace_start"() <{level = 10 : i32, message = "bqk,bkd->bqd"}> : () -> ()
    %cst_26 = arith.constant dense<0.000000e+00> : vector<1x8x8xf32>
    %85 = tpu.matmul %84, %71, %cst_26 {dimension_numbers = #tpu.dot_dimension_numbers<[2], [1], [1], [2], [0, 0, 0, 1, 1, 2], [0], [0]>} : vector<1x8x8xf32>, vector<1x8x8xf32>, vector<1x8x8xf32> -> vector<1x8x8xf32>
    "tpu.trace_stop"() : () -> ()
    %86 = vector.shape_cast %85 : vector<1x8x8xf32> to vector<8x8xf32>
    %c0_27 = arith.constant 0 : index
    %c24 = arith.constant 24 : index
    %87 = vector.load %arg6[%c0_27, %c24] : memref<8x32xf32, #tpu.memory_space<vmem>>, vector<8x8xf32>
    tpu.vector_store %arg6[%c0_27, %c24], %86 {strides = array<i32>} : memref<8x32xf32, #tpu.memory_space<vmem>>, vector<8x8xf32>,
    %c0_28 = arith.constant 0 : index
    %c0_29 = arith.constant 0 : index
    %88 = vector.load %arg6[%c0_28, %c0_29] : memref<8x32xf32, #tpu.memory_space<vmem>>, vector<8x32xf32>
    %c0_30 = arith.constant 0 : index
    %c0_31 = arith.constant 0 : index
    %89 = vector.load %arg3[%c0_30, %c0_31] : memref<32x32xf32, #tpu.memory_space<vmem>>, vector<32x32xf32>
    %cst_32 = arith.constant dense<0.000000e+00> : vector<8x32xf32>
    %90 = tpu.matmul %88, %89, %cst_32 {dimension_numbers = #tpu.dot_dimension_numbers<[1], [0], [0], [1], [0, 0, 1, 1], [], []>} : vector<8x32xf32>, vector<32x32xf32>, vector<8x32xf32> -> vector<8x32xf32>
    %c0_33 = arith.constant 0 : index
    %c0_34 = arith.constant 0 : index
    %91 = vector.load %arg4[%c0_33, %c0_34] : memref<1x32xf32, #tpu.memory_space<vmem>>, vector<1x32xf32>
    %92 = vector.broadcast %91 : vector<1x32xf32> to vector<8x32xf32>
    %93 = arith.addf %90, %92 : vector<8x32xf32>
    %c0_35 = arith.constant 0 : index
    %c0_36 = arith.constant 0 : index
    %94 = vector.load %arg5[%c0_35, %c0_36] : memref<8x32xf32, #tpu.memory_space<vmem>>, vector<8x32xf32>
    tpu.vector_store %arg5[%c0_35, %c0_36], %93 {strides = array<i32>} : memref<8x32xf32, #tpu.memory_space<vmem>>, vector<8x32xf32>,
    return
  }
  func.func @transform_0(%arg0: i32) -> (i32, i32) {
    %c0_i32 = arith.constant 0 : i32
    %c0_i32_0 = arith.constant 0 : i32
    return %arg0, %c0_i32 : i32, i32
  }
  func.func @transform_1(%arg0: i32) -> (i32, i32) {
    %c0_i32 = arith.constant 0 : i32
    %c0_i32_0 = arith.constant 0 : i32
    %c0_i32_1 = arith.constant 0 : i32
    return %c0_i32, %c0_i32_0 : i32, i32
  }
  func.func @transform_2(%arg0: i32) -> (i32, i32) {
    %c0_i32 = arith.constant 0 : i32
    %c0_i32_0 = arith.constant 0 : i32
    %c0_i32_1 = arith.constant 0 : i32
    return %c0_i32, %c0_i32_0 : i32, i32
  }
  func.func @transform_3(%arg0: i32) -> (i32, i32) {
    %c0_i32 = arith.constant 0 : i32
    %c0_i32_0 = arith.constant 0 : i32
    %c0_i32_1 = arith.constant 0 : i32
    return %c0_i32, %c0_i32_0 : i32, i32
  }
  func.func @transform_4(%arg0: i32) -> (i32, i32) {
    %c0_i32 = arith.constant 0 : i32
    %c0_i32_0 = arith.constant 0 : i32
    return %arg0, %c0_i32 : i32, i32
  }
}

</mosaic_0001>

<llo_original>
// kernel: tpu_custom_call.1
$region0: #{tpu_custom_call.1}
  #allocation0 [shape = 'u32[]', space=smem, size = 0x4, offset = 0x4, fixed_abs, tag = 'smem constant byte address 0x4 - core index']
  #allocation1 [shape = 'u32[72,128]{1,0:T(1,128)}', space=vmem, size = 0x9000, scoped, tag = 'internal scratch']
  #allocation2 [shape = 'f32[8,32]{1,0:T(8,128)}', space=vmem, size = 0x1000, scoped, tag = 'scratch operand']
  %s0 = inlined_call_operand.hbm [shape: f32[16,32], index: 0, kind: input, shape index: {}]
  %s1 = inlined_call_operand.hbm [shape: f32[32,128], index: 1, kind: input, shape index: {}]
  %s2 = inlined_call_operand.hbm [shape: f32[32,32], index: 2, kind: input, shape index: {}]
  %s3 = inlined_call_operand.vmem [shape: f32[1,32], index: 3, kind: input, shape index: {}]
  %s4 = inlined_call_operand.hbm [shape: f32[16,32], index: 4, kind: output, shape index: {}]
  %s5 = sld [smem:[#allocation0]]
  $region61: #{tpu_custom_call.1} parent=0
    _
  %s7 = ssub.s32 1, %s5
  %s8 = scalar_select 0, %s7, %s5
  $region1: #{tpu_custom_call.1} parent=0
    #allocation3 [shape = 'u8[8192]{0}', space=vmem, size = 0x2000, scoped, tag = 'input window, operand 0']
    #allocation4 [shape = 's32[2]{0}', space=sflag, size = 0x8, scoped, tag = 'scoped memory for tpu_custom_call.1']
    #allocation5 [shape = 's32[2]{0}', space=sflag, size = 0x8, scoped, tag = 'scoped memory for tpu_custom_call.1']
    #allocation6 [shape = 'u8[16384]{0}', space=vmem, size = 0x4000, scoped, tag = 'input window, operand 1, single buffered']
    #allocation7 [shape = 's32[1]{0}', space=sflag, size = 0x4, scoped, tag = 'scoped memory for tpu_custom_call.1']
    #allocation8 [shape = 'u8[16384]{0}', space=vmem, size = 0x4000, scoped, tag = 'input window, operand 2, single buffered']
    #allocation9 [shape = 'u8[8192]{0}', space=vmem, size = 0x2000, scoped, tag = 'output window, operand 0']
    %9 = vsyncpa [#allocation4], 0
    %s10 = scalar_lea.sflag [#allocation4], 1
    %11 = vsyncpa %s10, 0
    %12 = vsyncpa [#allocation7], 0
    %13 = vsyncpa [#allocation5], 0
    %s14 = scalar_lea.sflag [#allocation5], 1
    %15 = vsyncpa %s14, 0
    loop: start=0, step=1, limit=4
    $region2: #{tpu_custom_call.1} parent=1 // loop_pre_header
      _
    $region3: #{tpu_custom_call.1} parent=1 // loop_header
      %s17 = sphi 0, %s21
      %p18 = scmp.ge.s32.totalorder %s17, 4
      %s27 = sphi 0, %s29
      %s30 = sphi 0, %s27
      %s31 = sphi 0, %s30
      %s47 = sphi 0, %s31
      %s51 = sphi 0, %s51
      %s53 = sphi 0, %s51
      %s54 = sphi 0, %s53
      %s68 = sphi 0, %s54
      %s72 = sphi 0, %s72
      %s74 = sphi 0, %s72
      %s75 = sphi 0, %s74
      %s89 = sphi 0, %s75
      %s93 = sphi 0, %s93
      %s95 = sphi 0, %s93
      %s96 = sphi 0, %s95
      %s110 = sphi 0, %s96
      %s116 = sphi 0, %s118
      %s119 = sphi 0, %s116
      %s120 = sphi 0, %s119
      %s136 = sphi 0, %s120
    $region4: #{tpu_custom_call.1} parent=1 // loop_header_branch
      %20 = sbr.rel (%p18) target = $region8
    $region5: #{tpu_custom_call.1} parent=1 // loop_body
      %s22 = ssub.s32 %s17, 1
      %s23 = ssub.s32 %s17, 2
      %s24 = sadd.s32 %s17, 1
      %s25 = ssub.s32 %s17, %s24
      %p26 = scmp.eq.s32.totalorder %s25, 0
      %s28 = sadd.s32 %s27, 1
      %s29 = scalar_select %p26, %s27, %s28
      %p32 = pneg %p26
      %p33 = scmp.eq.s32.totalorder %s17, 1
      %p34 = por %p32, %p33
      %p35 = scmp.ne.s32.totalorder %s27, %s30
      %p36 = scmp.eq.s32.totalorder %s17, 0
      %p37 = por %p35, %p36
      %p38 = scmp.ne.s32.totalorder %s27, %s30
      %p39 = scmp.eq.s32.totalorder %s22, 1
      %p40 = por %p38, %p39
      %p41 = scmp.ne.s32.totalorder %s30, %s31
      %p42 = scmp.eq.s32.totalorder %s22, 0
      %p43 = por %p41, %p42
      %p44 = scmp.ne.s32.totalorder %s30, %s31
      %p45 = scmp.eq.s32.totalorder %s23, 1
      %p46 = por %p44, %p45
      %p48 = scmp.ne.s32.totalorder %s31, %s47
      %p49 = scmp.eq.s32.totalorder %s23, 0
      %p50 = por %p48, %p49
      %s52 = sadd.s32 %s51, 1
      %p55 = scmp.eq.s32.totalorder %s17, 1
      %p56 = scmp.ne.s32.totalorder %s51, %s53
      %p57 = scmp.eq.s32.totalorder %s17, 0
      %p58 = por %p56, %p57
      %p59 = scmp.ne.s32.totalorder %s51, %s53
      %p60 = scmp.eq.s32.totalorder %s22, 1
      %p61 = por %p59, %p60
      %p62 = scmp.ne.s32.totalorder %s53, %s54
      %p63 = scmp.eq.s32.totalorder %s22, 0
      %p64 = por %p62, %p63
      %p65 = scmp.ne.s32.totalorder %s53, %s54
      %p66 = scmp.eq.s32.totalorder %s23, 1
      %p67 = por %p65, %p66
      %p69 = scmp.ne.s32.totalorder %s54, %s68
      %p70 = scmp.eq.s32.totalorder %s23, 0
      %p71 = por %p69, %p70
      %s73 = sadd.s32 %s72, 1
      %p76 = scmp.eq.s32.totalorder %s17, 1
      %p77 = scmp.ne.s32.totalorder %s72, %s74
      %p78 = scmp.eq.s32.totalorder %s17, 0
      %p79 = por %p77, %p78
      %p80 = scmp.ne.s32.totalorder %s72, %s74
      %p81 = scmp.eq.s32.totalorder %s22, 1
      %p82 = por %p80, %p81
      %p83 = scmp.ne.s32.totalorder %s74, %s75
      %p84 = scmp.eq.s32.totalorder %s22, 0
      %p85 = por %p83, %p84
      %p86 = scmp.ne.s32.totalorder %s74, %s75
      %p87 = scmp.eq.s32.totalorder %s23, 1
      %p88 = por %p86, %p87
      %p90 = scmp.ne.s32.totalorder %s75, %s89
      %p91 = scmp.eq.s32.totalorder %s23, 0
      %p92 = por %p90, %p91
      %s94 = sadd.s32 %s93, 1
      %p97 = scmp.eq.s32.totalorder %s17, 1
      %p98 = scmp.ne.s32.totalorder %s93, %s95
      %p99 = scmp.eq.s32.totalorder %s17, 0
      %p100 = por %p98, %p99
      %p101 = scmp.ne.s32.totalorder %s93, %s95
      %p102 = scmp.eq.s32.totalorder %s22, 1
      %p103 = por %p101, %p102
      %p104 = scmp.ne.s32.totalorder %s95, %s96
      %p105 = scmp.eq.s32.totalorder %s22, 0
      %p106 = por %p104, %p105
      %p107 = scmp.ne.s32.totalorder %s95, %s96
      %p108 = scmp.eq.s32.totalorder %s23, 1
      %p109 = por %p107, %p108
      %p111 = scmp.ne.s32.totalorder %s96, %s110
      %p112 = scmp.eq.s32.totalorder %s23, 0
      %p113 = por %p111, %p112
      %s114 = ssub.s32 %s17, %s24
      %p115 = scmp.eq.s32.totalorder %s114, 0
      %s117 = sadd.s32 %s116, 1
      %s118 = scalar_select %p115, %s116, %s117
      %p121 = pneg %p115
      %p122 = scmp.eq.s32.totalorder %s17, 1
      %p123 = por %p121, %p122
      %p124 = scmp.ne.s32.totalorder %s116, %s119
      %p125 = scmp.eq.s32.totalorder %s17, 0
      %p126 = por %p124, %p125
      %p127 = scmp.ne.s32.totalorder %s116, %s119
      %p128 = scmp.eq.s32.totalorder %s22, 1
      %p129 = por %p127, %p128
      %p130 = scmp.ne.s32.totalorder %s119, %s120
      %p131 = scmp.eq.s32.totalorder %s22, 0
      %p132 = por %p130, %p131
      %p133 = scmp.ne.s32.totalorder %s119, %s120
      %p134 = scmp.eq.s32.totalorder %s23, 1
      %p135 = por %p133, %p134
      %p137 = scmp.ne.s32.totalorder %s120, %s136
      %p138 = scmp.eq.s32.totalorder %s23, 0
      %p139 = por %p137, %p138
      %p140 = scmp.le.s32.totalorder 1, %s17
      %p141 = scmp.lt.s32.totalorder %s17, 3
      %p142 = pnand %p140, %p141
      %p143 = pneg %p142
      // Predicated region
      $region9: #{tpu_custom_call.1} parent=5 // pred_check
        _
      $region10: #{tpu_custom_call.1} parent=5 // pred_check_branch
        %145 = sbr.rel (%p142) target = $region12
      $region11: #{tpu_custom_call.1} parent=5 // pred_region
        %s146 = ssub.s32 %s17, 1
        // Predicated region
        $region13: #{tpu_custom_call.1} parent=11 // pred_check
          %p147 = pneg %p64
        $region14: #{tpu_custom_call.1} parent=11 // pred_check_branch
          %149 = sbr.rel (%p147) target = $region16
        $region15: #{tpu_custom_call.1} parent=11 // pred_region
          %151 = vsyncadd [#allocation7], 0
          %s152 = sshll.u32 %s1, 4
          %s153 = int_to_ptr.hbm [resolvable:$true] %s152
          %s154 = sshll.u32 [#allocation6], 4
          %s155 = int_to_ptr.vmem [resolvable:$true] %s154
          %160 = dma.hbm_to_vmem [thread:$0]  %s153, 512, %s155, [#allocation7], 128, 128, 8
        $region16: #{tpu_custom_call.1} parent=11 // pred_fallthru
          _
        // Predicated region
        $region17: #{tpu_custom_call.1} parent=11 // pred_check
          %p161 = pneg %p85
        $region18: #{tpu_custom_call.1} parent=11 // pred_check_branch
          %163 = sbr.rel (%p161) target = $region20
        $region19: #{tpu_custom_call.1} parent=11 // pred_region
          %165 = vsyncadd [#allocation7], 0
          %s166 = sshll.u32 %s2, 4
          %s167 = int_to_ptr.hbm [resolvable:$true] %s166
          %s168 = sshll.u32 [#allocation8], 4
          %s169 = int_to_ptr.vmem [resolvable:$true] %s168
          %174 = dma.hbm_to_vmem [thread:$0]  %s167, 512, %s169, [#allocation7], 128, 128, 8
        $region20: #{tpu_custom_call.1} parent=11 // pred_fallthru
          _
        // Predicated region
        $region21: #{tpu_custom_call.1} parent=11 // pred_check
          %p175 = pneg %p106
        $region22: #{tpu_custom_call.1} parent=11 // pred_check_branch
          %177 = sbr.rel (%p175) target = $region24
        $region23: #{tpu_custom_call.1} parent=11 // pred_region
          _
        $region24: #{tpu_custom_call.1} parent=11 // pred_fallthru
          _
      $region12: #{tpu_custom_call.1} parent=5 // pred_fallthru
        _
      %p178 = scmp.lt.s32.totalorder %s17, 2
      // Predicated region
      $region25: #{tpu_custom_call.1} parent=5 // pred_check
        %p179 = pneg %p178
      $region26: #{tpu_custom_call.1} parent=5 // pred_check_branch
        %181 = sbr.rel (%p179) target = $region28
      $region27: #{tpu_custom_call.1} parent=5 // pred_region
        // Predicated region
        $region29: #{tpu_custom_call.1} parent=27 // pred_check
          %p182 = pneg %p37
        $region30: #{tpu_custom_call.1} parent=27 // pred_check_branch
          %184 = sbr.rel (%p182) target = $region32
        $region31: #{tpu_custom_call.1} parent=27 // pred_region
          %s185 = sand.u32 %s27, 1
          %s186 = scalar_lea.sflag [#allocation4], %s185
          %s187 = sand.u32 %s27, 1
          %s188 = smul.addr %s187, 8
          %s189 = scalar_lea.vmem [#allocation3], %s188
          %191 = vsyncadd %s186, 0
          %s192 = smul.addr %s17, 8
          %s193 = scalar_lea.hbm %s0, %s192
          %s195 = sshll.u32 %s193, 4
          %s196 = int_to_ptr.hbm [resolvable:$true] %s195
          %s197 = sshll.u32 %s189, 4
          %s198 = int_to_ptr.vmem [resolvable:$true] %s197
          %200 = dma.hbm_to_vmem [thread:$0]  %s196, 128, %s198, %s186
        $region32: #{tpu_custom_call.1} parent=27 // pred_fallthru
          _
      $region28: #{tpu_custom_call.1} parent=5 // pred_fallthru
        _
      %p201 = scmp.le.s32.totalorder 1, %s17
      %p202 = scmp.lt.s32.totalorder %s17, 3
      %p203 = pnand %p201, %p202
      %p204 = pneg %p203
      // Predicated region
      $region33: #{tpu_custom_call.1} parent=5 // pred_check
        _
      $region34: #{tpu_custom_call.1} parent=5 // pred_check_branch
        %206 = sbr.rel (%p203) target = $region36
      $region35: #{tpu_custom_call.1} parent=5 // pred_region
        %s207 = ssub.s32 %s17, 1
        %s208 = sand.u32 %s30, 1
        %s209 = scalar_lea.sflag [#allocation4], %s208
        %s210 = sand.u32 %s30, 1
        %s211 = smul.addr %s210, 8
        %s212 = scalar_lea.vmem [#allocation3], %s211
        // Predicated region
        $region37: #{tpu_custom_call.1} parent=35 // pred_check
          %p213 = pneg %p43
        $region38: #{tpu_custom_call.1} parent=35 // pred_check_branch
          %215 = sbr.rel (%p213) target = $region40
        $region39: #{tpu_custom_call.1} parent=35 // pred_region
          %217 = dma.done %s209, 128
        $region40: #{tpu_custom_call.1} parent=35 // pred_fallthru
          _
        // Predicated region
        $region41: #{tpu_custom_call.1} parent=35 // pred_check
          %p218 = pneg %p64
        $region42: #{tpu_custom_call.1} parent=35 // pred_check_branch
          %220 = sbr.rel (%p218) target = $region44
        $region43: #{tpu_custom_call.1} parent=35 // pred_region
          %222 = dma.done [#allocation7], 512
        $region44: #{tpu_custom_call.1} parent=35 // pred_fallthru
          _
        // Predicated region
        $region45: #{tpu_custom_call.1} parent=35 // pred_check
          %p223 = pneg %p85
        $region46: #{tpu_custom_call.1} parent=35 // pred_check_branch
          %225 = sbr.rel (%p223) target = $region48
        $region47: #{tpu_custom_call.1} parent=35 // pred_region
          %227 = dma.done [#allocation7], 512
        $region48: #{tpu_custom_call.1} parent=35 // pred_fallthru
          _
        %s228 = sand.u32 %s30, 1
        %s229 = scalar_lea.sflag [#allocation4], %s228
        %s230 = sand.u32 %s30, 1
        %s231 = smul.addr %s230, 8
        %s232 = scalar_lea.vmem [#allocation3], %s231
        %p233 = pneg %p43
        %p234 = pneg %p40
        %p235 = pneg %p64
        %p236 = pneg %p61
        %p237 = pneg %p85
        %p238 = pneg %p82
        %p239 = pneg %p106
        %p240 = pneg %p103
        %p241 = pneg %p132
        %p242 = pneg %p129
        %s243 = sand.u32 %s119, 1
        %s244 = scalar_lea.sflag [#allocation5], %s243
        %s245 = sand.u32 %s119, 1
        %s246 = smul.addr %s245, 8
        %s247 = scalar_lea.vmem [#allocation9], %s246
        %v248 = vld [vmem:[%s212] sm:$0xff]
        %v249 = vld [vmem:[#allocation6] sm:$0xff]
        %v250 = vld [vmem:[#allocation6 + $0x8] sm:$0xff]
        %v251 = vld [vmem:[#allocation6 + $0x10] sm:$0xff]
        %v252 = vld [vmem:[#allocation6 + $0x18] sm:$0xff]
        %vm253 = vcmask 261120
        %v255 = vsel %vm253, %v248, 0
        %257 = vmatpush.msra.mxu0 0.0
        %258 = vmatpush.msra.mxu0 0.0
        %259 = vmatpush.msra.mxu0 0.0
        %260 = vmatpush.msra.mxu0 0.0
        %261 = vmatpush.msra.mxu0 0.0
        %262 = vmatpush.msra.mxu0 0.0
        %263 = vmatpush.msra.mxu0 0.0
        %264 = vmatpush.msra.mxu0 0.0
        %265 = vmatpush.msra.mxu0 0.0
        %266 = vmatpush.msra.mxu0 0.0
        %267 = vmatpush.msra.mxu0 0.0
        %268 = vmatpush.msra.mxu0 0.0
        %269 = vmatpush.msra.mxu0 %v252
        %270 = vmatpush.msra.mxu0 %v251
        %271 = vmatpush.msra.mxu0 %v250
        %272 = vmatpush.msra.mxu0 %v249
        %273 = vmatmul.f32.gmra.mxu0 %v255
        %v274 = vpop.f32.mrf.mxu0
        %v275 = vadd.f32 0.0, %v274
        %276 = vdwg.mxu0
        %v277 = vlaneseq
        %v278 = vshrl.u32 %v277, 7
        %v279 = vlaneseq
        %v280 = vand.u32 %v279, 127
        %vm281 = vcmp.ge.s32.totalorder %v278, %v280
        %283 = vrot.lane.b32.xlu0 %v275, 96
        %v284 = vpop.permute.xlu0 %283
        %vm285 = vcmask 64512
        %v286 = vsel %vm285, %v275, 0
        %v288 = vsel %vm285, %v284, 0
        %290 = vmatpush.xpose.msra.mxu0 0.0
        %291 = vmatpush.xpose.msra.mxu0 0.0
        %292 = vmatpush.xpose.msra.mxu0 0.0
        %293 = vmatpush.xpose.msra.mxu0 0.0
        %294 = vmatpush.xpose.msra.mxu0 0.0
        %295 = vmatpush.xpose.msra.mxu0 0.0
        %296 = vmatpush.xpose.msra.mxu0 0.0
        %297 = vmatpush.xpose.msra.mxu0 0.0
        %298 = vmatpush.xpose.msra.mxu0 0.0
        %299 = vmatpush.xpose.msra.mxu0 0.0
        %300 = vmatpush.xpose.msra.mxu0 0.0
        %301 = vmatpush.xpose.msra.mxu0 0.0
        %302 = vmatpush.xpose.msra.mxu0 0.0
        %303 = vmatpush.xpose.msra.mxu0 0.0
        %304 = vmatpush.xpose.msra.mxu0 0.0
        %305 = vmatpush.xpose.msra.mxu0 %v288
        %306 = vmatmul.f32.gmra.mxu0 %v286
        %v307 = vpop.f32.mrf.mxu0
        %v308 = vadd.f32 0.0, %v307
        %309 = vdwg.mxu0
        %v310 = vsel %vm281, %v308, -1e+30
        %v311 = vsel %vm285, %v310, -inf
        %312 = vmax.xlane.f32.xlu0 %v311
        %v313 = vpop.xlane.xlu0 %312
        %v314 = vsub.f32 %v310, %v313
        %v315 = vmul.f32 %v314, 1.442695
        %v316 = vpow.pop %v315
        %v317 = vsel %vm285, %v316, 0.0
        %318 = vadd.xlane.f32.xlu0 %v317
        %v319 = vpop.xlane.xlu0 %318
        %v320 = vrcp.pop %v319
        %v321 = vmul.f32 %v319, %v320
        %v322 = vsub.f32 1.0, %v321
        %v323 = vmul.f32 %v320, %v322
        %v324 = vadd.f32 %v320, %v323
        %vm325 = vweird.f32 %v319
        %vm326 = vweird.f32 %v320
        %vm327 = vmor %vm325, %vm326
        %v328 = vsel %vm327, %v320, %v324
        %v329 = vand.u32 2147483647, %v319
        %vm330 = vcmp.eq.f32.partialorder %v329, 8.507059e+37
        %v331 = vand.u32 %v319, 2147483648
        %v332 = vor.u32 1.1754944e-38, %v331
        %v333 = vsel %vm330, %v332, %v328
        %v334 = vmul.f32 %v316, %v333
        %335 = vrot.lane.b32.xlu0 %v275, 64
        %v336 = vpop.permute.xlu0 %335
        %v339 = vsel %vm285, %v334, 0
        %341 = vmatpush.msra.mxu0 0.0
        %342 = vmatpush.msra.mxu0 0.0
        %343 = vmatpush.msra.mxu0 0.0
        %344 = vmatpush.msra.mxu0 0.0
        %345 = vmatpush.msra.mxu0 0.0
        %346 = vmatpush.msra.mxu0 0.0
        %347 = vmatpush.msra.mxu0 0.0
        %348 = vmatpush.msra.mxu0 0.0
        %349 = vmatpush.msra.mxu0 0.0
        %350 = vmatpush.msra.mxu0 0.0
        %351 = vmatpush.msra.mxu0 0.0
        %352 = vmatpush.msra.mxu0 0.0
        %353 = vmatpush.msra.mxu0 0.0
        %354 = vmatpush.msra.mxu0 0.0
        %355 = vmatpush.msra.mxu0 0.0
        %356 = vmatpush.msra.mxu0 %v336
        %357 = vmatmul.f32.gmra.mxu0 %v339
        %v358 = vpop.f32.mrf.mxu0
        %v359 = vadd.f32 0.0, %v358
        %360 = vdwg.mxu0
        %361 = vst.msk [vmem:[#allocation2] sm:$0xff] %vm285, %v359
        %362 = vrot.lane.b32.xlu0 %v275, 120
        %v363 = vpop.permute.xlu0 %362
        %364 = vrot.lane.b32.xlu0 %v275, 88
        %v365 = vpop.permute.xlu0 %364
        %v366 = vsel %vm285, %v363, 0
        %v368 = vsel %vm285, %v365, 0
        %370 = vmatpush.xpose.msra.mxu0 0.0
        %371 = vmatpush.xpose.msra.mxu0 0.0
        %372 = vmatpush.xpose.msra.mxu0 0.0
        %373 = vmatpush.xpose.msra.mxu0 0.0
        %374 = vmatpush.xpose.msra.mxu0 0.0
        %375 = vmatpush.xpose.msra.mxu0 0.0
        %376 = vmatpush.xpose.msra.mxu0 0.0
        %377 = vmatpush.xpose.msra.mxu0 0.0
        %378 = vmatpush.xpose.msra.mxu0 0.0
        %379 = vmatpush.xpose.msra.mxu0 0.0
        %380 = vmatpush.xpose.msra.mxu0 0.0
        %381 = vmatpush.xpose.msra.mxu0 0.0
        %382 = vmatpush.xpose.msra.mxu0 0.0
        %383 = vmatpush.xpose.msra.mxu0 0.0
        %384 = vmatpush.xpose.msra.mxu0 0.0
        %385 = vmatpush.xpose.msra.mxu0 %v368
        %386 = vmatmul.f32.gmra.mxu0 %v366
        %v387 = vpop.f32.mrf.mxu0
        %v388 = vadd.f32 0.0, %v387
        %389 = vdwg.mxu0
        %v390 = vsel %vm281, %v388, -1e+30
        %v391 = vsel %vm285, %v390, -inf
        %392 = vmax.xlane.f32.xlu0 %v391
        %v393 = vpop.xlane.xlu0 %392
        %v394 = vsub.f32 %v390, %v393
        %v395 = vmul.f32 %v394, 1.442695
        %v396 = vpow.pop %v395
        %v397 = vsel %vm285, %v396, 0.0
        %398 = vadd.xlane.f32.xlu0 %v397
        %v399 = vpop.xlane.xlu0 %398
        %v400 = vrcp.pop %v399
        %v401 = vmul.f32 %v399, %v400
        %v402 = vsub.f32 1.0, %v401
        %v403 = vmul.f32 %v400, %v402
        %v404 = vadd.f32 %v400, %v403
        %vm405 = vweird.f32 %v399
        %vm406 = vweird.f32 %v400
        %vm407 = vmor %vm405, %vm406
        %v408 = vsel %vm407, %v400, %v404
        %v409 = vand.u32 2147483647, %v399
        %vm410 = vcmp.eq.f32.partialorder %v409, 8.507059e+37
        %v411 = vand.u32 %v399, 2147483648
        %v412 = vor.u32 1.1754944e-38, %v411
        %v413 = vsel %vm410, %v412, %v408
        %v414 = vmul.f32 %v396, %v413
        %415 = vrot.lane.b32.xlu0 %v275, 56
        %v416 = vpop.permute.xlu0 %415
        %v419 = vsel %vm285, %v414, 0
        %421 = vmatpush.msra.mxu0 0.0
        %422 = vmatpush.msra.mxu0 0.0
        %423 = vmatpush.msra.mxu0 0.0
        %424 = vmatpush.msra.mxu0 0.0
        %425 = vmatpush.msra.mxu0 0.0
        %426 = vmatpush.msra.mxu0 0.0
        %427 = vmatpush.msra.mxu0 0.0
        %428 = vmatpush.msra.mxu0 0.0
        %429 = vmatpush.msra.mxu0 0.0
        %430 = vmatpush.msra.mxu0 0.0
        %431 = vmatpush.msra.mxu0 0.0
        %432 = vmatpush.msra.mxu0 0.0
        %433 = vmatpush.msra.mxu0 0.0
        %434 = vmatpush.msra.mxu0 0.0
        %435 = vmatpush.msra.mxu0 0.0
        %436 = vmatpush.msra.mxu0 %v416
        %437 = vmatmul.f32.gmra.mxu0 %v419
        %v438 = vpop.f32.mrf.mxu0
        %v439 = vadd.f32 0.0, %v438
        %440 = vdwg.mxu0
        %442 = vrot.lane.b32.xlu0 %v439, 8
        %v443 = vpop.permute.xlu0 %442
        %vm445 = vcmask 130112
        %446 = vst.msk [vmem:[#allocation2] sm:$0xff] %vm445, %v443
        %447 = vrot.lane.b32.xlu0 %v275, 112
        %v448 = vpop.permute.xlu0 %447
        %449 = vrot.lane.b32.xlu0 %v275, 80
        %v450 = vpop.permute.xlu0 %449
        %v451 = vsel %vm285, %v448, 0
        %v453 = vsel %vm285, %v450, 0
        %455 = vmatpush.xpose.msra.mxu0 0.0
        %456 = vmatpush.xpose.msra.mxu0 0.0
        %457 = vmatpush.xpose.msra.mxu0 0.0
        %458 = vmatpush.xpose.msra.mxu0 0.0
        %459 = vmatpush.xpose.msra.mxu0 0.0
        %460 = vmatpush.xpose.msra.mxu0 0.0
        %461 = vmatpush.xpose.msra.mxu0 0.0
        %462 = vmatpush.xpose.msra.mxu0 0.0
        %463 = vmatpush.xpose.msra.mxu0 0.0
        %464 = vmatpush.xpose.msra.mxu0 0.0
        %465 = vmatpush.xpose.msra.mxu0 0.0
        %466 = vmatpush.xpose.msra.mxu0 0.0
        %467 = vmatpush.xpose.msra.mxu0 0.0
        %468 = vmatpush.xpose.msra.mxu0 0.0
        %469 = vmatpush.xpose.msra.mxu0 0.0
        %470 = vmatpush.xpose.msra.mxu0 %v453
        %471 = vmatmul.f32.gmra.mxu0 %v451
        %v472 = vpop.f32.mrf.mxu0
        %v473 = vadd.f32 0.0, %v472
        %474 = vdwg.mxu0
        %v475 = vsel %vm281, %v473, -1e+30
        %v476 = vsel %vm285, %v475, -inf
        %477 = vmax.xlane.f32.xlu0 %v476
        %v478 = vpop.xlane.xlu0 %477
        %v479 = vsub.f32 %v475, %v478
        %v480 = vmul.f32 %v479, 1.442695
        %v481 = vpow.pop %v480
        %v482 = vsel %vm285, %v481, 0.0
        %483 = vadd.xlane.f32.xlu0 %v482
        %v484 = vpop.xlane.xlu0 %483
        %v485 = vrcp.pop %v484
        %v486 = vmul.f32 %v484, %v485
        %v487 = vsub.f32 1.0, %v486
        %v488 = vmul.f32 %v485, %v487
        %v489 = vadd.f32 %v485, %v488
        %vm490 = vweird.f32 %v484
        %vm491 = vweird.f32 %v485
        %vm492 = vmor %vm490, %vm491
        %v493 = vsel %vm492, %v485, %v489
        %v494 = vand.u32 2147483647, %v484
        %vm495 = vcmp.eq.f32.partialorder %v494, 8.507059e+37
        %v496 = vand.u32 %v484, 2147483648
        %v497 = vor.u32 1.1754944e-38, %v496
        %v498 = vsel %vm495, %v497, %v493
        %v499 = vmul.f32 %v481, %v498
        %500 = vrot.lane.b32.xlu0 %v275, 48
        %v501 = vpop.permute.xlu0 %500
        %v504 = vsel %vm285, %v499, 0
        %506 = vmatpush.msra.mxu0 0.0
        %507 = vmatpush.msra.mxu0 0.0
        %508 = vmatpush.msra.mxu0 0.0
        %509 = vmatpush.msra.mxu0 0.0
        %510 = vmatpush.msra.mxu0 0.0
        %511 = vmatpush.msra.mxu0 0.0
        %512 = vmatpush.msra.mxu0 0.0
        %513 = vmatpush.msra.mxu0 0.0
        %514 = vmatpush.msra.mxu0 0.0
        %515 = vmatpush.msra.mxu0 0.0
        %516 = vmatpush.msra.mxu0 0.0
        %517 = vmatpush.msra.mxu0 0.0
        %518 = vmatpush.msra.mxu0 0.0
        %519 = vmatpush.msra.mxu0 0.0
        %520 = vmatpush.msra.mxu0 0.0
        %521 = vmatpush.msra.mxu0 %v501
        %522 = vmatmul.f32.gmra.mxu0 %v504
        %v523 = vpop.f32.mrf.mxu0
        %v524 = vadd.f32 0.0, %v523
        %525 = vdwg.mxu0
        %527 = vrot.lane.b32.xlu0 %v524, 16
        %v528 = vpop.permute.xlu0 %527
        %vm530 = vcmask 195712
        %531 = vst.msk [vmem:[#allocation2] sm:$0xff] %vm530, %v528
        %532 = vrot.lane.b32.xlu0 %v275, 104
        %v533 = vpop.permute.xlu0 %532
        %534 = vrot.lane.b32.xlu0 %v275, 72
        %v535 = vpop.permute.xlu0 %534
        %v536 = vsel %vm285, %v533, 0
        %v538 = vsel %vm285, %v535, 0
        %540 = vmatpush.xpose.msra.mxu0 0.0
        %541 = vmatpush.xpose.msra.mxu0 0.0
        %542 = vmatpush.xpose.msra.mxu0 0.0
        %543 = vmatpush.xpose.msra.mxu0 0.0
        %544 = vmatpush.xpose.msra.mxu0 0.0
        %545 = vmatpush.xpose.msra.mxu0 0.0
        %546 = vmatpush.xpose.msra.mxu0 0.0
        %547 = vmatpush.xpose.msra.mxu0 0.0
        %548 = vmatpush.xpose.msra.mxu0 0.0
        %549 = vmatpush.xpose.msra.mxu0 0.0
        %550 = vmatpush.xpose.msra.mxu0 0.0
        %551 = vmatpush.xpose.msra.mxu0 0.0
        %552 = vmatpush.xpose.msra.mxu0 0.0
        %553 = vmatpush.xpose.msra.mxu0 0.0
        %554 = vmatpush.xpose.msra.mxu0 0.0
        %555 = vmatpush.xpose.msra.mxu0 %v538
        %556 = vmatmul.f32.gmra.mxu0 %v536
        %v557 = vpop.f32.mrf.mxu0
        %v558 = vadd.f32 0.0, %v557
        %559 = vdwg.mxu0
        %v560 = vsel %vm281, %v558, -1e+30
        %v561 = vsel %vm285, %v560, -inf
        %562 = vmax.xlane.f32.xlu0 %v561
        %v563 = vpop.xlane.xlu0 %562
        %v564 = vsub.f32 %v560, %v563
        %v565 = vmul.f32 %v564, 1.442695
        %v566 = vpow.pop %v565
        %v567 = vsel %vm285, %v566, 0.0
        %568 = vadd.xlane.f32.xlu0 %v567
        %v569 = vpop.xlane.xlu0 %568
        %v570 = vrcp.pop %v569
        %v571 = vmul.f32 %v569, %v570
        %v572 = vsub.f32 1.0, %v571
        %v573 = vmul.f32 %v570, %v572
        %v574 = vadd.f32 %v570, %v573
        %vm575 = vweird.f32 %v569
        %vm576 = vweird.f32 %v570
        %vm577 = vmor %vm575, %vm576
        %v578 = vsel %vm577, %v570, %v574
        %v579 = vand.u32 2147483647, %v569
        %vm580 = vcmp.eq.f32.partialorder %v579, 8.507059e+37
        %v581 = vand.u32 %v569, 2147483648
        %v582 = vor.u32 1.1754944e-38, %v581
        %v583 = vsel %vm580, %v582, %v578
        %v584 = vmul.f32 %v566, %v583
        %585 = vrot.lane.b32.xlu0 %v275, 40
        %v586 = vpop.permute.xlu0 %585
        %v589 = vsel %vm285, %v584, 0
        %591 = vmatpush.msra.mxu0 0.0
        %592 = vmatpush.msra.mxu0 0.0
        %593 = vmatpush.msra.mxu0 0.0
        %594 = vmatpush.msra.mxu0 0.0
        %595 = vmatpush.msra.mxu0 0.0
        %596 = vmatpush.msra.mxu0 0.0
        %597 = vmatpush.msra.mxu0 0.0
        %598 = vmatpush.msra.mxu0 0.0
        %599 = vmatpush.msra.mxu0 0.0
        %600 = vmatpush.msra.mxu0 0.0
        %601 = vmatpush.msra.mxu0 0.0
        %602 = vmatpush.msra.mxu0 0.0
        %603 = vmatpush.msra.mxu0 0.0
        %604 = vmatpush.msra.mxu0 0.0
        %605 = vmatpush.msra.mxu0 0.0
        %606 = vmatpush.msra.mxu0 %v586
        %607 = vmatmul.f32.gmra.mxu0 %v589
        %v608 = vpop.f32.mrf.mxu0
        %v609 = vadd.f32 0.0, %v608
        %610 = vdwg.mxu0
        %612 = vrot.lane.b32.xlu0 %v609, 24
        %v613 = vpop.permute.xlu0 %612
        %vm615 = vcmask 261312
        %616 = vst.msk [vmem:[#allocation2] sm:$0xff] %vm615, %v613
        %v617 = vld [vmem:[#allocation2] sm:$0xff]
        %v618 = vld [vmem:[#allocation8] sm:$0xff]
        %v619 = vld [vmem:[#allocation8 + $0x8] sm:$0xff]
        %v620 = vld [vmem:[#allocation8 + $0x10] sm:$0xff]
        %v621 = vld [vmem:[#allocation8 + $0x18] sm:$0xff]
        %v622 = vld [vmem:[%s3] sm:$0x1]
        %v624 = vperm.slane %v622, 0
        %v627 = vsel %vm253, %v617, 0
        %629 = vmatpush.msra.mxu0 0.0
        %630 = vmatpush.msra.mxu0 0.0
        %631 = vmatpush.msra.mxu0 0.0
        %632 = vmatpush.msra.mxu0 0.0
        %633 = vmatpush.msra.mxu0 0.0
        %634 = vmatpush.msra.mxu0 0.0
        %635 = vmatpush.msra.mxu0 0.0
        %636 = vmatpush.msra.mxu0 0.0
        %637 = vmatpush.msra.mxu0 0.0
        %638 = vmatpush.msra.mxu0 0.0
        %639 = vmatpush.msra.mxu0 0.0
        %640 = vmatpush.msra.mxu0 0.0
        %641 = vmatpush.msra.mxu0 %v621
        %642 = vmatpush.msra.mxu0 %v620
        %643 = vmatpush.msra.mxu0 %v619
        %644 = vmatpush.msra.mxu0 %v618
        %645 = vmatmul.f32.gmra.mxu0 %v627
        %v646 = vpop.f32.mrf.mxu0
        %v647 = vadd.f32 %v624, %v646
        %648 = vdwg.mxu0
        %649 = vst.msk [vmem:[%s247] sm:$0xff] %vm253, %v647
        %s650 = sand.u32 %s119, 1
        %s651 = scalar_lea.sflag [#allocation5], %s650
        %s652 = sand.u32 %s119, 1
        %s653 = smul.addr %s652, 8
        %s654 = scalar_lea.vmem [#allocation9], %s653
        // Predicated region
        $region49: #{tpu_custom_call.1} parent=35 // pred_check
          %p655 = pneg %p129
        $region50: #{tpu_custom_call.1} parent=35 // pred_check_branch
          %657 = sbr.rel (%p655) target = $region52
        $region51: #{tpu_custom_call.1} parent=35 // pred_region
          %659 = vsyncadd %s651, 0
          %s660 = smul.addr %s22, 8
          %s661 = scalar_lea.hbm %s4, %s660
          %s663 = sshll.u32 %s654, 4
          %s664 = int_to_ptr.vmem [resolvable:$true] %s663
          %s665 = sshll.u32 %s661, 4
          %s666 = int_to_ptr.hbm [resolvable:$true] %s665
          %668 = dma.vmem_to_hbm [thread:$0]  %s664, 128, %s666, %s651
        $region52: #{tpu_custom_call.1} parent=35 // pred_fallthru
          _
      $region36: #{tpu_custom_call.1} parent=5 // pred_fallthru
        _
      %p669 = scmp.le.s32.totalorder 2, %s17
      // Predicated region
      $region53: #{tpu_custom_call.1} parent=5 // pred_check
        %p670 = pneg %p669
      $region54: #{tpu_custom_call.1} parent=5 // pred_check_branch
        %672 = sbr.rel (%p670) target = $region56
      $region55: #{tpu_custom_call.1} parent=5 // pred_region
        %s673 = ssub.s32 %s17, 2
        // Predicated region
        $region57: #{tpu_custom_call.1} parent=55 // pred_check
          %p674 = pneg %p135
        $region58: #{tpu_custom_call.1} parent=55 // pred_check_branch
          %676 = sbr.rel (%p674) target = $region60
        $region59: #{tpu_custom_call.1} parent=55 // pred_region
          %s677 = sand.u32 %s120, 1
          %s678 = scalar_lea.sflag [#allocation5], %s677
          %s679 = sand.u32 %s120, 1
          %s680 = smul.addr %s679, 8
          %s681 = scalar_lea.vmem [#allocation9], %s680
          %683 = dma.done %s678, 128
        $region60: #{tpu_custom_call.1} parent=55 // pred_fallthru
          _
      $region56: #{tpu_custom_call.1} parent=5 // pred_fallthru
        _
    $region6: #{tpu_custom_call.1} parent=1 // loop_footer
      %s21 = sadd.s32 1, %s17
    $region7: #{tpu_custom_call.1} parent=1 // loop_footer_branch
      %16 = sbr.rel target = $region3
    $region8: #{tpu_custom_call.1} parent=1 // loop_exit
      _
    %684 = vsyncpa [#allocation4], 1
    %s685 = scalar_lea.sflag [#allocation4], 1
    %686 = vsyncpa %s685, 1
    %687 = vsyncpa [#allocation7], 1
    %688 = vsyncpa [#allocation5], 1
    %s689 = scalar_lea.sflag [#allocation5], 1
    %690 = vsyncpa %s689, 1

</llo_original>
